<compile_context>
chip_gen: v6e
topology: v6e:2x2x1
jax: 0.10.0
libtpu: 0.0.40
codegen_flags: <defaults>
</compile_context>

<pallas_src>
import functools

import jax
import jax.numpy as jnp
from jax import lax
from jax.experimental import pallas as pl
from jax.experimental.pallas import tpu as pltpu


# -----------------------------------------------------------------------------
# Kernel: whole MLP fused, one VMEM-resident pass per batch tile.
# -----------------------------------------------------------------------------
def apartment_mlp_kernel(
    x_ref,              # (TB, F)   f32   natural-layout input tile
    w1_ref, b1_ref,     # (128, F)  bf16 , (128, 1) epi   (BN folded in)
    w2_ref, b2_ref,     # (64, 128) bf16 , (64, 1)  epi
    w3_ref, b3_ref,     # (32, 64)  bf16 , (32, 1)  epi
    w4_ref, b4_ref,     # (16, 32)  bf16 , (16, 1)  epi
    w5_ref, b5_ref,     # (16, 1)   f32  , (1, 1)   f32
    o_ref,              # (1, TB)   f32   lane-dense output tile
    *, epilogue_dtype,
):
    # Layer 1: contract the F axis of both operands (w1 @ x.T) on the MXU, so
    # x needs no wrapper-side transpose; result is already (128, TB) with the
    # batch on lanes.
    x_bf = x_ref[...].astype(jnp.bfloat16)                        # (TB, F)
    acc = lax.dot_general(
        w1_ref[...], x_bf,
        dimension_numbers=(((1,), (1,)), ((), ())),
        preferred_element_type=jnp.float32)                       # (128, TB)
    h = jnp.maximum(acc.astype(epilogue_dtype) + b1_ref[...], 0)

    def layer(h_prev, w_ref, b_ref):
        # MXU: (d_out, d_in) @ (d_in, TB), f32 accumulation; epilogue in the
        # generation-appropriate dtype (bf16 on v6e/v7x, f32 on v5e).
        a = jnp.dot(w_ref[...], h_prev.astype(jnp.bfloat16),
                    preferred_element_type=jnp.float32)           # (d_out, TB)
        return jnp.maximum(a.astype(epilogue_dtype) + b_ref[...], 0)

    h = layer(h, w2_ref, b2_ref)                                  # (64, TB)
    h = layer(h, w3_ref, b3_ref)                                  # (32, TB)
    h = layer(h, w4_ref, b4_ref)                                  # (16, TB)

    # Final Linear(16 -> 1): elementwise multiply (VPU) + cross-sublane sum
    # (XLU) in f32 instead of a 1-column MXU matmul; result is (1, TB),
    # i.e. lane-dense for the store.
    out = jnp.sum(h.astype(jnp.float32) * w5_ref[...], axis=0, keepdims=True)
    o_ref[...] = out + b5_ref[...]                                # (1, TB) f32


# -----------------------------------------------------------------------------
# Wrapper: BN folding, dtype prep, batch tiling/padding, pallas_call plumbing.
# -----------------------------------------------------------------------------
def _default_epilogue_dtype():
    kind = jax.devices()[0].device_kind.lower()
    # bf16 VALU is native on v6e/v7x; v5e and older keep the f32 epilogue.
    return jnp.bfloat16 if ("v6" in kind or "v7" in kind) else jnp.float32


def _round_up(n, m):
    return ((n + m - 1) // m) * m


@functools.partial(jax.jit, static_argnames=("batch_tile", "eps", "epilogue_dtype"))
def apartment_model_forward(x, params, *, batch_tile=2048, eps=1e-5,
                            epilogue_dtype=None):
    """x: (B, num_features) float32  ->  (B, 1) float32 (eval-mode forward)."""
    if epilogue_dtype is None:
        epilogue_dtype = _default_epilogue_dtype()
    B, F = x.shape
    # Big tiles for HBM-roofline efficiency, but never over-pad a small batch.
    TB = min(batch_tile, _round_up(B, 128))
    num_tiles = pl.cdiv(B, TB)
    Bp = num_tiles * TB

    # Fold inference-mode BatchNorm1d into the preceding Linear (one-time
    # parameter transform) and pre-cast matmul weights to bf16 / biases to the
    # epilogue dtype:
    #   scale = gamma / sqrt(running_var + eps), shift = beta - running_mean*scale
    #   W' = scale[:, None] * W,  b' = scale * b + shift
    flat_args = []
    for i in range(1, 5):
        w, b = params[f"w{i}"], params[f"b{i}"]                      # (out, in), (out,)
        scale = params[f"gamma{i}"] / jnp.sqrt(params[f"rvar{i}"] + eps)
        shift = params[f"beta{i}"] - params[f"rmean{i}"] * scale
        w_f = (w * scale[:, None]).astype(jnp.bfloat16)              # (out, in) bf16
        b_f = (b * scale + shift).astype(epilogue_dtype)[:, None]    # (out, 1)
        flat_args += [w_f, b_f]
    flat_args += [
        jnp.reshape(params["w5"], (-1, 1)).astype(jnp.float32),      # (16, 1) f32
        jnp.reshape(params["b5"], (1, 1)).astype(jnp.float32),       # (1, 1)  f32
    ]

    # x stays in its natural (B, F) layout — no transpose/cast HBM round trip.
    # Zero-pad the batch only when it is not a tile multiple (pick TB | B in
    # production to avoid even this copy); padded rows are sliced off below.
    if Bp != B:
        x = jnp.pad(x, ((0, Bp - B), (0, 0)))

    x_spec = pl.BlockSpec((TB, F), lambda i: (i, 0))
    # Whole-array blocks with constant index_maps: fetched once, VMEM-resident
    # across the entire grid (block index never changes -> no re-DMA).
    param_specs = [pl.BlockSpec(a.shape, lambda i: (0, 0)) for a in flat_args]
    out_spec = pl.BlockSpec((1, TB), lambda i: (0, i))               # lane-dense store

    kernel = functools.partial(apartment_mlp_kernel, epilogue_dtype=epilogue_dtype)
    out = pl.pallas_call(
        kernel,
        out_shape=jax.ShapeDtypeStruct((1, Bp), jnp.float32),
        grid_spec=pltpu.PrefetchScalarGridSpec(
            num_scalar_prefetch=0,
            grid=(num_tiles,),
            in_specs=[x_spec] + param_specs,
            out_specs=out_spec,
        ),
        compiler_params=pltpu.CompilerParams(
            dimension_semantics=("parallel",),   # batch tiles are independent
        ),
    )(x, *flat_args)

    return out[0, :B][:, None]


# -----------------------------------------------------------------------------
# Deterministic synthetic parameters (PyTorch conventions: W is (out, in)).
# -----------------------------------------------------------------------------
def init_params(key, num_features):
    dims_in = [num_features, 128, 64, 32, 16]
    dims_out = [128, 64, 32, 16, 1]
    params = {}
    keys = jax.random.split(key, 2 * len(dims_out) + 4 * 4)
    ki = 0
    for i, (din, dout) in enumerate(zip(dims_in, dims_out)):
        bound = 1.0 / float(din) ** 0.5
        params[f"w{i+1}"] = jax.random.uniform(
            keys[ki], (dout, din), jnp.float32, -bound, bound); ki += 1
        params[f"b{i+1}"] = jax.random.uniform(
            keys[ki], (dout,), jnp.float32, -bound, bound); ki += 1
    # Non-trivial BatchNorm running stats / affine so the fold is exercised.
    for i, d in enumerate([128, 64, 32, 16]):
        params[f"gamma{i+1}"] = jax.random.uniform(keys[ki], (d,), jnp.float32, 0.5, 1.5); ki += 1
        params[f"beta{i+1}"] = 0.1 * jax.random.normal(keys[ki], (d,), jnp.float32); ki += 1
        params[f"rmean{i+1}"] = 0.1 * jax.random.normal(keys[ki], (d,), jnp.float32); ki += 1
        params[f"rvar{i+1}"] = jax.random.uniform(keys[ki], (d,), jnp.float32, 0.5, 1.5); ki += 1
    return params


# Pure f32 reference (exact eval-mode PyTorch semantics).
def reference_forward(x, params, eps=1e-5):
    h = x
    for i in range(1, 5):
        y = h @ params[f"w{i}"].T + params[f"b{i}"]
        scale = params[f"gamma{i}"] / jnp.sqrt(params[f"rvar{i}"] + eps)
        shift = params[f"beta{i}"] - params[f"rmean{i}"] * scale
        h = jnp.maximum(y * scale + shift, 0.0)
    return h @ params["w5"].T + params["b5"]


# Reference that mirrors the kernel's numerics (BN folded, bf16 matmul
# operands, f32 accumulation, epilogue in `epilogue_dtype`) for a tight check.
def reference_forward_matched(x, params, epilogue_dtype, eps=1e-5):
    h_mm = x.astype(jnp.bfloat16)
    h = None
    for i in range(1, 5):
        scale = params[f"gamma{i}"] / jnp.sqrt(params[f"rvar{i}"] + eps)
        shift = params[f"beta{i}"] - params[f"rmean{i}"] * scale
        w_f = (params[f"w{i}"] * scale[:, None]).astype(jnp.bfloat16)
        b_f = (params[f"b{i}"] * scale + shift).astype(epilogue_dtype)
        acc = jnp.dot(h_mm, w_f.T, preferred_element_type=jnp.float32)
        h = jnp.maximum(acc.astype(epilogue_dtype) + b_f, 0)
        h_mm = h.astype(jnp.bfloat16)
    return h.astype(jnp.float32) @ params["w5"].T + params["b5"]


if __name__ == "__main__":
    key = jax.random.PRNGKey(0)
    k_param, k_x = jax.random.split(key)

    num_features = 32
    batch = 300          # not a tile multiple -> exercises the pad/slice path
    params = init_params(k_param, num_features)
    x = jax.random.normal(k_x, (batch, num_features), jnp.float32)

    epi = _default_epilogue_dtype()
    out = apartment_model_forward(x, params, batch_tile=2048, epilogue_dtype=epi)
    out = jax.block_until_ready(out)
    assert out.shape == (batch, 1)

    ref_match = reference_forward_matched(x, params, epi)
    ref_exact = reference_forward(x, params)
    err_m = jnp.max(jnp.abs(out - ref_match))
    err_e = jnp.max(jnp.abs(out - ref_exact))
    assert jnp.allclose(out, ref_match, atol=3e-3, rtol=3e-3), (
        f"kernel vs numerics-matched ref, max err {err_m}")
    assert jnp.allclose(out, ref_exact, atol=5e-2, rtol=5e-2), (
        f"kernel vs f32 ref, max err {err_e}")
    print("KERNEL_OK")
</pallas_src>

<mosaic_0001>
module attributes {stable_mosaic.version = 11 : i64} {
  func.func @apartment_mlp_kernel(%arg0: i32, %arg1: memref<384x32xf32, #tpu.memory_space<vmem>>, %arg2: memref<128x32xbf16, #tpu.memory_space<vmem>>, %arg3: memref<128x1xf32, #tpu.memory_space<vmem>>, %arg4: memref<64x128xbf16, #tpu.memory_space<vmem>>, %arg5: memref<64x1xf32, #tpu.memory_space<vmem>>, %arg6: memref<32x64xbf16, #tpu.memory_space<vmem>>, %arg7: memref<32x1xf32, #tpu.memory_space<vmem>>, %arg8: memref<16x32xbf16, #tpu.memory_space<vmem>>, %arg9: memref<16x1xf32, #tpu.memory_space<vmem>>, %arg10: memref<16x1xf32, #tpu.memory_space<vmem>>, %arg11: memref<1x1xf32, #tpu.memory_space<vmem>>, %arg12: memref<1x384xf32, #tpu.memory_space<vmem>>) attributes {dimension_semantics = [#tpu.dimension_semantics<parallel>], iteration_bounds = array<i64: 1>, scalar_prefetch = 0 : i64, scratch_operands = 0 : i64, tpu.core_type = #tpu.core_type<tc>, window_params = [{transform_indices = @transform_0, window_bounds = array<i64: 384, 32>}, {pipeline_mode = #tpu.pipeline_mode<synchronous>, transform_indices = @transform_1, window_bounds = array<i64: 128, 32>}, {pipeline_mode = #tpu.pipeline_mode<synchronous>, transform_indices = @transform_2, window_bounds = array<i64: 128, 1>}, {pipeline_mode = #tpu.pipeline_mode<synchronous>, transform_indices = @transform_3, window_bounds = array<i64: 64, 128>}, {pipeline_mode = #tpu.pipeline_mode<synchronous>, transform_indices = @transform_4, window_bounds = array<i64: 64, 1>}, {pipeline_mode = #tpu.pipeline_mode<synchronous>, transform_indices = @transform_5, window_bounds = array<i64: 32, 64>}, {pipeline_mode = #tpu.pipeline_mode<synchronous>, transform_indices = @transform_6, window_bounds = array<i64: 32, 1>}, {pipeline_mode = #tpu.pipeline_mode<synchronous>, transform_indices = @transform_7, window_bounds = array<i64: 16, 32>}, {pipeline_mode = #tpu.pipeline_mode<synchronous>, transform_indices = @transform_8, window_bounds = array<i64: 16, 1>}, {pipeline_mode = #tpu.pipeline_mode<synchronous>, transform_indices = @transform_9, window_bounds = array<i64: 16, 1>}, {pipeline_mode = #tpu.pipeline_mode<synchronous>, transform_indices = @transform_10, window_bounds = array<i64: 1, 1>}, {transform_indices = @transform_11, window_bounds = array<i64: 1, 384>}]} {
    %c0 = arith.constant 0 : index
    %c0_0 = arith.constant 0 : index
    %0 = vector.load %arg1[%c0, %c0_0] : memref<384x32xf32, #tpu.memory_space<vmem>>, vector<384x32xf32>
    %1 = arith.truncf %0 : vector<384x32xf32> to vector<384x32xbf16>
    %c0_1 = arith.constant 0 : index
    %c0_2 = arith.constant 0 : index
    %2 = vector.load %arg2[%c0_1, %c0_2] : memref<128x32xbf16, #tpu.memory_space<vmem>>, vector<128x32xbf16>
    %cst = arith.constant dense<0.000000e+00> : vector<128x384xf32>
    %3 = tpu.matmul %2, %1, %cst {dimension_numbers = #tpu.dot_dimension_numbers<[1], [1], [0], [0], [0, 0, 1, 0], [], []>} : vector<128x32xbf16>, vector<384x32xbf16>, vector<128x384xf32> -> vector<128x384xf32>
    %c0_3 = arith.constant 0 : index
    %c0_4 = arith.constant 0 : index
    %4 = vector.load %arg3[%c0_3, %c0_4] : memref<128x1xf32, #tpu.memory_space<vmem>>, vector<128x1xf32>
    %5 = vector.broadcast %4 : vector<128x1xf32> to vector<128x384xf32>
    %6 = arith.addf %3, %5 : vector<128x384xf32>
    %cst_5 = arith.constant 0.000000e+00 : f32
    %7 = vector.broadcast %cst_5 : f32 to vector<128x384xf32>
    %8 = arith.maximumf %6, %7 : vector<128x384xf32>
    %c0_6 = arith.constant 0 : index
    %c0_7 = arith.constant 0 : index
    %9 = vector.load %arg4[%c0_6, %c0_7] : memref<64x128xbf16, #tpu.memory_space<vmem>>, vector<64x128xbf16>
    %10 = arith.truncf %8 : vector<128x384xf32> to vector<128x384xbf16>
    %cst_8 = arith.constant dense<0.000000e+00> : vector<64x384xf32>
    %11 = tpu.matmul %9, %10, %cst_8 {dimension_numbers = #tpu.dot_dimension_numbers<[1], [0], [0], [1], [0, 0, 1, 1], [], []>} : vector<64x128xbf16>, vector<128x384xbf16>, vector<64x384xf32> -> vector<64x384xf32>
    %c0_9 = arith.constant 0 : index
    %c0_10 = arith.constant 0 : index
    %12 = vector.load %arg5[%c0_9, %c0_10] : memref<64x1xf32, #tpu.memory_space<vmem>>, vector<64x1xf32>
    %13 = vector.broadcast %12 : vector<64x1xf32> to vector<64x384xf32>
    %14 = arith.addf %11, %13 : vector<64x384xf32>
    %cst_11 = arith.constant 0.000000e+00 : f32
    %15 = vector.broadcast %cst_11 : f32 to vector<64x384xf32>
    %16 = arith.maximumf %14, %15 : vector<64x384xf32>
    %c0_12 = arith.constant 0 : index
    %c0_13 = arith.constant 0 : index
    %17 = vector.load %arg6[%c0_12, %c0_13] : memref<32x64xbf16, #tpu.memory_space<vmem>>, vector<32x64xbf16>
    %18 = arith.truncf %16 : vector<64x384xf32> to vector<64x384xbf16>
    %cst_14 = arith.constant dense<0.000000e+00> : vector<32x384xf32>
    %19 = tpu.matmul %17, %18, %cst_14 {dimension_numbers = #tpu.dot_dimension_numbers<[1], [0], [0], [1], [0, 0, 1, 1], [], []>} : vector<32x64xbf16>, vector<64x384xbf16>, vector<32x384xf32> -> vector<32x384xf32>
    %c0_15 = arith.constant 0 : index
    %c0_16 = arith.constant 0 : index
    %20 = vector.load %arg7[%c0_15, %c0_16] : memref<32x1xf32, #tpu.memory_space<vmem>>, vector<32x1xf32>
    %21 = vector.broadcast %20 : vector<32x1xf32> to vector<32x384xf32>
    %22 = arith.addf %19, %21 : vector<32x384xf32>
    %cst_17 = arith.constant 0.000000e+00 : f32
    %23 = vector.broadcast %cst_17 : f32 to vector<32x384xf32>
    %24 = arith.maximumf %22, %23 : vector<32x384xf32>
    %c0_18 = arith.constant 0 : index
    %c0_19 = arith.constant 0 : index
    %25 = vector.load %arg8[%c0_18, %c0_19] : memref<16x32xbf16, #tpu.memory_space<vmem>>, vector<16x32xbf16>
    %26 = arith.truncf %24 : vector<32x384xf32> to vector<32x384xbf16>
    %cst_20 = arith.constant dense<0.000000e+00> : vector<16x384xf32>
    %27 = tpu.matmul %25, %26, %cst_20 {dimension_numbers = #tpu.dot_dimension_numbers<[1], [0], [0], [1], [0, 0, 1, 1], [], []>} : vector<16x32xbf16>, vector<32x384xbf16>, vector<16x384xf32> -> vector<16x384xf32>
    %c0_21 = arith.constant 0 : index
    %c0_22 = arith.constant 0 : index
    %28 = vector.load %arg9[%c0_21, %c0_22] : memref<16x1xf32, #tpu.memory_space<vmem>>, vector<16x1xf32>
    %29 = vector.broadcast %28 : vector<16x1xf32> to vector<16x384xf32>
    %30 = arith.addf %27, %29 : vector<16x384xf32>
    %cst_23 = arith.constant 0.000000e+00 : f32
    %31 = vector.broadcast %cst_23 : f32 to vector<16x384xf32>
    %32 = arith.maximumf %30, %31 : vector<16x384xf32>
    %c0_24 = arith.constant 0 : index
    %c0_25 = arith.constant 0 : index
    %33 = vector.load %arg10[%c0_24, %c0_25] : memref<16x1xf32, #tpu.memory_space<vmem>>, vector<16x1xf32>
    %34 = vector.broadcast %33 : vector<16x1xf32> to vector<16x384xf32>
    %35 = arith.mulf %32, %34 : vector<16x384xf32>
    %cst_26 = arith.constant dense<0.000000e+00> : vector<384xf32>
    %36 = vector.multi_reduction <add>, %35, %cst_26 [0] : vector<16x384xf32> to vector<384xf32>
    %37 = vector.shape_cast %36 : vector<384xf32> to vector<1x384xf32>
    %c0_27 = arith.constant 0 : index
    %c0_28 = arith.constant 0 : index
    %38 = vector.load %arg11[%c0_27, %c0_28] : memref<1x1xf32, #tpu.memory_space<vmem>>, vector<1x1xf32>
    %39 = vector.broadcast %38 : vector<1x1xf32> to vector<1x384xf32>
    %40 = arith.addf %37, %39 : vector<1x384xf32>
    %c0_29 = arith.constant 0 : index
    %c0_30 = arith.constant 0 : index
    %41 = vector.load %arg12[%c0_29, %c0_30] : memref<1x384xf32, #tpu.memory_space<vmem>>, vector<1x384xf32>
    tpu.vector_store %arg12[%c0_29, %c0_30], %40 {strides = array<i32>} : memref<1x384xf32, #tpu.memory_space<vmem>>, vector<1x384xf32>,
    return
  }
  func.func @transform_0(%arg0: i32) -> (i32, i32) {
    %c0_i32 = arith.constant 0 : i32
    %c0_i32_0 = arith.constant 0 : i32
    return %arg0, %c0_i32 : i32, i32
  }
  func.func @transform_1(%arg0: i32) -> (i32, i32) {
    %c0_i32 = arith.constant 0 : i32
    %c0_i32_0 = arith.constant 0 : i32
    %c0_i32_1 = arith.constant 0 : i32
    return %c0_i32, %c0_i32_0 : i32, i32
  }
  func.func @transform_2(%arg0: i32) -> (i32, i32) {
    %c0_i32 = arith.constant 0 : i32
    %c0_i32_0 = arith.constant 0 : i32
    %c0_i32_1 = arith.constant 0 : i32
    return %c0_i32, %c0_i32_0 : i32, i32
  }
  func.func @transform_3(%arg0: i32) -> (i32, i32) {
    %c0_i32 = arith.constant 0 : i32
    %c0_i32_0 = arith.constant 0 : i32
    %c0_i32_1 = arith.constant 0 : i32
    return %c0_i32, %c0_i32_0 : i32, i32
  }
  func.func @transform_4(%arg0: i32) -> (i32, i32) {
    %c0_i32 = arith.constant 0 : i32
    %c0_i32_0 = arith.constant 0 : i32
    %c0_i32_1 = arith.constant 0 : i32
    return %c0_i32, %c0_i32_0 : i32, i32
  }
  func.func @transform_5(%arg0: i32) -> (i32, i32) {
    %c0_i32 = arith.constant 0 : i32
    %c0_i32_0 = arith.constant 0 : i32
    %c0_i32_1 = arith.constant 0 : i32
    return %c0_i32, %c0_i32_0 : i32, i32
  }
  func.func @transform_6(%arg0: i32) -> (i32, i32) {
    %c0_i32 = arith.constant 0 : i32
    %c0_i32_0 = arith.constant 0 : i32
    %c0_i32_1 = arith.constant 0 : i32
    return %c0_i32, %c0_i32_0 : i32, i32
  }
  func.func @transform_7(%arg0: i32) -> (i32, i32) {
    %c0_i32 = arith.constant 0 : i32
    %c0_i32_0 = arith.constant 0 : i32
    %c0_i32_1 = arith.constant 0 : i32
    return %c0_i32, %c0_i32_0 : i32, i32
  }
  func.func @transform_8(%arg0: i32) -> (i32, i32) {
    %c0_i32 = arith.constant 0 : i32
    %c0_i32_0 = arith.constant 0 : i32
    %c0_i32_1 = arith.constant 0 : i32
    return %c0_i32, %c0_i32_0 : i32, i32
  }
  func.func @transform_9(%arg0: i32) -> (i32, i32) {
    %c0_i32 = arith.constant 0 : i32
    %c0_i32_0 = arith.constant 0 : i32
    %c0_i32_1 = arith.constant 0 : i32
    return %c0_i32, %c0_i32_0 : i32, i32
  }
  func.func @transform_10(%arg0: i32) -> (i32, i32) {
    %c0_i32 = arith.constant 0 : i32
    %c0_i32_0 = arith.constant 0 : i32
    %c0_i32_1 = arith.constant 0 : i32
    return %c0_i32, %c0_i32_0 : i32, i32
  }
  func.func @transform_11(%arg0: i32) -> (i32, i32) {
    %c0_i32 = arith.constant 0 : i32
    %c0_i32_0 = arith.constant 0 : i32
    return %c0_i32, %arg0 : i32, i32
  }
}

</mosaic_0001>

<llo_original>
// kernel: apartment_model_forward.1
$region0: #{apartment_model_forward.1}
  #allocation0 [shape = 'u32[]', space=smem, size = 0x4, offset = 0x4, fixed_abs, tag = 'smem constant byte address 0x4 - core index']
  #allocation1 [shape = 'u32[144,128]{1,0:T(1,128)}', space=vmem, size = 0x12000, scoped, tag = 'internal scratch']
  #allocation2 [shape = 'f32[1,1]{1,0:T(1,128)S(1)}', space=vmem, size = 0x200, scoped, tag = 'scoped memory for apartment_model_forward.1']
  %s0 = inlined_call_operand.vmem [shape: f32[384,32], index: 0, kind: input, shape index: {}]
  %s1 = inlined_call_operand.vmem [shape: bf16[128,32], index: 1, kind: input, shape index: {}]
  %s2 = inlined_call_operand.vmem [shape: f32[128,1], index: 2, kind: input, shape index: {}]
  %s3 = inlined_call_operand.vmem [shape: bf16[64,128], index: 3, kind: input, shape index: {}]
  %s4 = inlined_call_operand.vmem [shape: f32[64,1], index: 4, kind: input, shape index: {}]
  %s5 = inlined_call_operand.vmem [shape: bf16[32,64], index: 5, kind: input, shape index: {}]
  %s6 = inlined_call_operand.vmem [shape: f32[32,1], index: 6, kind: input, shape index: {}]
  %s7 = inlined_call_operand.vmem [shape: bf16[16,32], index: 7, kind: input, shape index: {}]
  %s8 = inlined_call_operand.vmem [shape: f32[16,1], index: 8, kind: input, shape index: {}]
  %s9 = inlined_call_operand.vmem [shape: f32[16,1], index: 9, kind: input, shape index: {}]
  %s10 = inlined_call_operand.<no memory space> [shape: f32[1,1], index: 10, kind: input, shape index: {}]
  %s11 = inlined_call_operand.vmem [shape: f32[1,384], index: 11, kind: output, shape index: {}]
  %s12 = sld [smem:[#allocation0]]
  $region54: #{apartment_model_forward.1} parent=0
    _
  %s14 = ssub.s32 1, %s12
  %s15 = scalar_select 0, %s14, %s12
  %v16 = vstv %s10
  %17 = vst [vmem:[#allocation2] sm:$0x1] %v16
  // Predicated region
  $region2: #{apartment_model_forward.1} parent=0 // pred_check
    _
  $region3: #{apartment_model_forward.1} parent=0 // pred_check_branch
    %19 = sbr.rel (0) target = $region5
  $region4: #{apartment_model_forward.1} parent=0 // pred_region
    _
  $region5: #{apartment_model_forward.1} parent=0 // pred_fallthru
    _
  // Predicated region
  $region6: #{apartment_model_forward.1} parent=0 // pred_check
    _
  $region7: #{apartment_model_forward.1} parent=0 // pred_check_branch
    %21 = sbr.rel (0) target = $region9
  $region8: #{apartment_model_forward.1} parent=0 // pred_region
    _
  $region9: #{apartment_model_forward.1} parent=0 // pred_fallthru
    _
  // Predicated region
  $region10: #{apartment_model_forward.1} parent=0 // pred_check
    _
  $region11: #{apartment_model_forward.1} parent=0 // pred_check_branch
    %23 = sbr.rel (0) target = $region13
  $region12: #{apartment_model_forward.1} parent=0 // pred_region
    _
  $region13: #{apartment_model_forward.1} parent=0 // pred_fallthru
    _
  // Predicated region
  $region14: #{apartment_model_forward.1} parent=0 // pred_check
    _
  $region15: #{apartment_model_forward.1} parent=0 // pred_check_branch
    %25 = sbr.rel (0) target = $region17
  $region16: #{apartment_model_forward.1} parent=0 // pred_region
    _
  $region17: #{apartment_model_forward.1} parent=0 // pred_fallthru
    _
  // Predicated region
  $region18: #{apartment_model_forward.1} parent=0 // pred_check
    _
  $region19: #{apartment_model_forward.1} parent=0 // pred_check_branch
    %27 = sbr.rel (0) target = $region21
  $region20: #{apartment_model_forward.1} parent=0 // pred_region
    _
  $region21: #{apartment_model_forward.1} parent=0 // pred_fallthru
    _
  // Predicated region
  $region22: #{apartment_model_forward.1} parent=0 // pred_check
    _
  $region23: #{apartment_model_forward.1} parent=0 // pred_check_branch
    %29 = sbr.rel (0) target = $region25
  $region24: #{apartment_model_forward.1} parent=0 // pred_region
    _
  $region25: #{apartment_model_forward.1} parent=0 // pred_fallthru
    _
  // Predicated region
  $region26: #{apartment_model_forward.1} parent=0 // pred_check
    _
  $region27: #{apartment_model_forward.1} parent=0 // pred_check_branch
    %31 = sbr.rel (0) target = $region29
  $region28: #{apartment_model_forward.1} parent=0 // pred_region
    _
  $region29: #{apartment_model_forward.1} parent=0 // pred_fallthru
    _
  // Predicated region
  $region30: #{apartment_model_forward.1} parent=0 // pred_check
    _
  $region31: #{apartment_model_forward.1} parent=0 // pred_check_branch
    %33 = sbr.rel (0) target = $region33
  $region32: #{apartment_model_forward.1} parent=0 // pred_region
    _
  $region33: #{apartment_model_forward.1} parent=0 // pred_fallthru
    _
  // Predicated region
  $region34: #{apartment_model_forward.1} parent=0 // pred_check
    _
  $region35: #{apartment_model_forward.1} parent=0 // pred_check_branch
    %35 = sbr.rel (0) target = $region37
  $region36: #{apartment_model_forward.1} parent=0 // pred_region
    _
  $region37: #{apartment_model_forward.1} parent=0 // pred_fallthru
    _
  // Predicated region
  $region38: #{apartment_model_forward.1} parent=0 // pred_check
    _
  $region39: #{apartment_model_forward.1} parent=0 // pred_check_branch
    %37 = sbr.rel (0) target = $region41
  $region40: #{apartment_model_forward.1} parent=0 // pred_region
    _
  $region41: #{apartment_model_forward.1} parent=0 // pred_fallthru
    _
  // Predicated region
  $region42: #{apartment_model_forward.1} parent=0 // pred_check
    _
  $region43: #{apartment_model_forward.1} parent=0 // pred_check_branch
    %39 = sbr.rel (0) target = $region45
  $region44: #{apartment_model_forward.1} parent=0 // pred_region
    _
  $region45: #{apartment_model_forward.1} parent=0 // pred_fallthru
    _
  %v41 = vld [vmem:[%s0] sm:$0xff]
  %v42 = vld [vmem:[%s0 + $0x8] sm:$0xff]
  %v43 = vld [vmem:[%s0 + $0x10] sm:$0xff]
  %v44 = vld [vmem:[%s0 + $0x18] sm:$0xff]
  %v45 = vld [vmem:[%s0 + $0x20] sm:$0xff]
  %v46 = vld [vmem:[%s0 + $0x28] sm:$0xff]
  %v47 = vld [vmem:[%s0 + $0x30] sm:$0xff]
  %v48 = vld [vmem:[%s0 + $0x38] sm:$0xff]
  %v49 = vld [vmem:[%s0 + $0x40] sm:$0xff]
  %v50 = vld [vmem:[%s0 + $0x48] sm:$0xff]
  %v51 = vld [vmem:[%s0 + $0x50] sm:$0xff]
  %v52 = vld [vmem:[%s0 + $0x58] sm:$0xff]
  %v53 = vld [vmem:[%s0 + $0x60] sm:$0xff]
  %v54 = vld [vmem:[%s0 + $0x68] sm:$0xff]
  %v55 = vld [vmem:[%s0 + $0x70] sm:$0xff]
  %v56 = vld [vmem:[%s0 + $0x78] sm:$0xff]
  %v57 = vld [vmem:[%s0 + $0x80] sm:$0xff]
  %v58 = vld [vmem:[%s0 + $0x88] sm:$0xff]
  %v59 = vld [vmem:[%s0 + $0x90] sm:$0xff]
  %v60 = vld [vmem:[%s0 + $0x98] sm:$0xff]
  %v61 = vld [vmem:[%s0 + $0xa0] sm:$0xff]
  %v62 = vld [vmem:[%s0 + $0xa8] sm:$0xff]
  %v63 = vld [vmem:[%s0 + $0xb0] sm:$0xff]
  %v64 = vld [vmem:[%s0 + $0xb8] sm:$0xff]
  %v65 = vld [vmem:[%s0 + $0xc0] sm:$0xff]
  %v66 = vld [vmem:[%s0 + $0xc8] sm:$0xff]
  %v67 = vld [vmem:[%s0 + $0xd0] sm:$0xff]
  %v68 = vld [vmem:[%s0 + $0xd8] sm:$0xff]
  %v69 = vld [vmem:[%s0 + $0xe0] sm:$0xff]
  %v70 = vld [vmem:[%s0 + $0xe8] sm:$0xff]
  %v71 = vld [vmem:[%s0 + $0xf0] sm:$0xff]
  %v72 = vld [vmem:[%s0 + $0xf8] sm:$0xff]
  %v73 = vld [vmem:[%s0 + $0x100] sm:$0xff]
  %v74 = vld [vmem:[%s0 + $0x108] sm:$0xff]
  %v75 = vld [vmem:[%s0 + $0x110] sm:$0xff]
  %v76 = vld [vmem:[%s0 + $0x118] sm:$0xff]
  %v77 = vld [vmem:[%s0 + $0x120] sm:$0xff]
  %v78 = vld [vmem:[%s0 + $0x128] sm:$0xff]
  %v79 = vld [vmem:[%s0 + $0x130] sm:$0xff]
  %v80 = vld [vmem:[%s0 + $0x138] sm:$0xff]
  %v81 = vld [vmem:[%s0 + $0x140] sm:$0xff]
  %v82 = vld [vmem:[%s0 + $0x148] sm:$0xff]
  %v83 = vld [vmem:[%s0 + $0x150] sm:$0xff]
  %v84 = vld [vmem:[%s0 + $0x158] sm:$0xff]
  %v85 = vld [vmem:[%s0 + $0x160] sm:$0xff]
  %v86 = vld [vmem:[%s0 + $0x168] sm:$0xff]
  %v87 = vld [vmem:[%s0 + $0x170] sm:$0xff]
  %v88 = vld [vmem:[%s0 + $0x178] sm:$0xff]
  %v89 = vpack.c.bf16 %v42, %v41
  %v90 = vpack.c.bf16 %v44, %v43
  %v91 = vpack.c.bf16 %v46, %v45
  %v92 = vpack.c.bf16 %v48, %v47
  %v93 = vpack.c.bf16 %v50, %v49
  %v94 = vpack.c.bf16 %v52, %v51
  %v95 = vpack.c.bf16 %v54, %v53
  %v96 = vpack.c.bf16 %v56, %v55
  %v97 = vpack.c.bf16 %v58, %v57
  %v98 = vpack.c.bf16 %v60, %v59
  %v99 = vpack.c.bf16 %v62, %v61
  %v100 = vpack.c.bf16 %v64, %v63
  %v101 = vpack.c.bf16 %v66, %v65
  %v102 = vpack.c.bf16 %v68, %v67
  %v103 = vpack.c.bf16 %v70, %v69
  %v104 = vpack.c.bf16 %v72, %v71
  %v105 = vpack.c.bf16 %v74, %v73
  %v106 = vpack.c.bf16 %v76, %v75
  %v107 = vpack.c.bf16 %v78, %v77
  %v108 = vpack.c.bf16 %v80, %v79
  %v109 = vpack.c.bf16 %v82, %v81
  %v110 = vpack.c.bf16 %v84, %v83
  %v111 = vpack.c.bf16 %v86, %v85
  %v112 = vpack.c.bf16 %v88, %v87
  %v113 = vld [vmem:[%s1] sm:$0xf]
  %v114 = vld [vmem:[%s1 + $0x4] sm:$0xf]
  %v115 = vld [vmem:[%s1 + $0x8] sm:$0xf]
  %v116 = vld [vmem:[%s1 + $0xc] sm:$0xf]
  %v117 = vld [vmem:[%s1 + $0x10] sm:$0xf]
  %v118 = vld [vmem:[%s1 + $0x14] sm:$0xf]
  %v119 = vld [vmem:[%s1 + $0x18] sm:$0xf]
  %v120 = vld [vmem:[%s1 + $0x1c] sm:$0xf]
  %v121 = vld [vmem:[%s1 + $0x20] sm:$0xf]
  %v122 = vld [vmem:[%s1 + $0x24] sm:$0xf]
  %v123 = vld [vmem:[%s1 + $0x28] sm:$0xf]
  %v124 = vld [vmem:[%s1 + $0x2c] sm:$0xf]
  %v125 = vld [vmem:[%s1 + $0x30] sm:$0xf]
  %v126 = vld [vmem:[%s1 + $0x34] sm:$0xf]
  %v127 = vld [vmem:[%s1 + $0x38] sm:$0xf]
  %v128 = vld [vmem:[%s1 + $0x3c] sm:$0xf]
  %v129 = vld [vmem:[%s2] sm:$0xff]
  %v130 = vld [vmem:[%s2 + $0x8] sm:$0xff]
  %v131 = vld [vmem:[%s2 + $0x10] sm:$0xff]
  %v132 = vld [vmem:[%s2 + $0x18] sm:$0xff]
  %v133 = vld [vmem:[%s2 + $0x20] sm:$0xff]
  %v134 = vld [vmem:[%s2 + $0x28] sm:$0xff]
  %v135 = vld [vmem:[%s2 + $0x30] sm:$0xff]
  %v136 = vld [vmem:[%s2 + $0x38] sm:$0xff]
  %v137 = vld [vmem:[%s2 + $0x40] sm:$0xff]
  %v138 = vld [vmem:[%s2 + $0x48] sm:$0xff]
  %v139 = vld [vmem:[%s2 + $0x50] sm:$0xff]
  %v140 = vld [vmem:[%s2 + $0x58] sm:$0xff]
  %v141 = vld [vmem:[%s2 + $0x60] sm:$0xff]
  %v142 = vld [vmem:[%s2 + $0x68] sm:$0xff]
  %v143 = vld [vmem:[%s2 + $0x70] sm:$0xff]
  %v144 = vld [vmem:[%s2 + $0x78] sm:$0xff]
  %146 = vset.pattern.permute.xlu0 0
  %147 = vperm.xlu0 %146, %v129
  %v148 = vpop.permute.xlu0 %147
  %151 = vset.pattern.permute.xlu0 0
  %152 = vperm.xlu0 %151, %v130
  %v153 = vpop.permute.xlu0 %152
  %156 = vset.pattern.permute.xlu0 0
  %157 = vperm.xlu0 %156, %v131
  %v158 = vpop.permute.xlu0 %157
  %161 = vset.pattern.permute.xlu0 0
  %162 = vperm.xlu0 %161, %v132
  %v163 = vpop.permute.xlu0 %162
  %166 = vset.pattern.permute.xlu0 0
  %167 = vperm.xlu0 %166, %v133
  %v168 = vpop.permute.xlu0 %167
  %171 = vset.pattern.permute.xlu0 0
  %172 = vperm.xlu0 %171, %v134
  %v173 = vpop.permute.xlu0 %172
  %176 = vset.pattern.permute.xlu0 0
  %177 = vperm.xlu0 %176, %v135
  %v178 = vpop.permute.xlu0 %177
  %181 = vset.pattern.permute.xlu0 0
  %182 = vperm.xlu0 %181, %v136
  %v183 = vpop.permute.xlu0 %182
  %186 = vset.pattern.permute.xlu0 0
  %187 = vperm.xlu0 %186, %v137
  %v188 = vpop.permute.xlu0 %187
  %191 = vset.pattern.permute.xlu0 0
  %192 = vperm.xlu0 %191, %v138
  %v193 = vpop.permute.xlu0 %192
  %196 = vset.pattern.permute.xlu0 0
  %197 = vperm.xlu0 %196, %v139
  %v198 = vpop.permute.xlu0 %197
  %201 = vset.pattern.permute.xlu0 0
  %202 = vperm.xlu0 %201, %v140
  %v203 = vpop.permute.xlu0 %202
  %206 = vset.pattern.permute.xlu0 0
  %207 = vperm.xlu0 %206, %v141
  %v208 = vpop.permute.xlu0 %207
  %211 = vset.pattern.permute.xlu0 0
  %212 = vperm.xlu0 %211, %v142
  %v213 = vpop.permute.xlu0 %212
  %216 = vset.pattern.permute.xlu0 0
  %217 = vperm.xlu0 %216, %v143
  %v218 = vpop.permute.xlu0 %217
  %221 = vset.pattern.permute.xlu0 0
  %222 = vperm.xlu0 %221, %v144
  %v223 = vpop.permute.xlu0 %222
  %v241 = vunpack.c.l.b16 %v113
  %v242 = vunpack.c.l.b16 %v114
  %v243 = vunpack.c.l.b16 %v115
  %v244 = vunpack.c.l.b16 %v116
  %v245 = vunpack.c.l.b16 %v117
  %v246 = vunpack.c.l.b16 %v118
  %v247 = vunpack.c.l.b16 %v119
  %v248 = vunpack.c.l.b16 %v120
  %v249 = vunpack.c.l.b16 %v121
  %v250 = vunpack.c.l.b16 %v122
  %v251 = vunpack.c.l.b16 %v123
  %v252 = vunpack.c.l.b16 %v124
  %v253 = vunpack.c.l.b16 %v125
  %v254 = vunpack.c.l.b16 %v126
  %v255 = vunpack.c.l.b16 %v127
  %v256 = vunpack.c.l.b16 %v128
  %v257 = vpack.c.b16 %v242, %v241
  %v258 = vpack.c.b16 %v244, %v243
  %v259 = vpack.c.b16 %v246, %v245
  %v260 = vpack.c.b16 %v248, %v247
  %v261 = vpack.c.b16 %v250, %v249
  %v262 = vpack.c.b16 %v252, %v251
  %v263 = vpack.c.b16 %v254, %v253
  %v264 = vpack.c.b16 %v256, %v255
  %vm265 = vcmask 261120
  %v267 = vsel %vm265, %v257, 0
  %v270 = vsel %vm265, %v258, 0
  %v273 = vsel %vm265, %v259, 0
  %v276 = vsel %vm265, %v260, 0
  %v279 = vsel %vm265, %v261, 0
  %v282 = vsel %vm265, %v262, 0
  %v285 = vsel %vm265, %v263, 0
  %v288 = vsel %vm265, %v264, 0
  %v291 = vsel %vm265, %v89, 0
  %v294 = vsel %vm265, %v90, 0
  %v297 = vsel %vm265, %v91, 0
  %v300 = vsel %vm265, %v92, 0
  %v303 = vsel %vm265, %v93, 0
  %v306 = vsel %vm265, %v94, 0
  %v309 = vsel %vm265, %v95, 0
  %v312 = vsel %vm265, %v96, 0
  %v315 = vsel %vm265, %v97, 0
  %v318 = vsel %vm265, %v98, 0
  %v321 = vsel %vm265, %v99, 0
  %v324 = vsel %vm265, %v100, 0
  %v327 = vsel %vm265, %v101, 0
  %v330 = vsel %vm265, %v102, 0
  %v333 = vsel %vm265, %v103, 0
  %v336 = vsel %vm265, %v104, 0
  %v339 = vsel %vm265, %v105, 0
  %v342 = vsel %vm265, %v106, 0
  %v345 = vsel %vm265, %v107, 0
  %v348 = vsel %vm265, %v108, 0
  %v351 = vsel %vm265, %v109, 0
  %v354 = vsel %vm265, %v110, 0
  %v357 = vsel %vm265, %v111, 0
  %v360 = vsel %vm265, %v112, 0
  %362 = vmatprep.subr.bf16.mxu0 0
  %363 = vmatpush1.bf16.xpose.msra.mxu0 %v312
  %364 = vmatprep.subr.bf16.mxu0 0
  %365 = vmatpush1.bf16.xpose.msra.mxu0 %v309
  %366 = vmatprep.subr.bf16.mxu0 0
  %367 = vmatpush1.bf16.xpose.msra.mxu0 %v306
  %368 = vmatprep.subr.bf16.mxu0 0
  %369 = vmatpush1.bf16.xpose.msra.mxu0 %v303
  %370 = vmatprep.subr.bf16.mxu0 0
  %371 = vmatpush1.bf16.xpose.msra.mxu0 %v300
  %372 = vmatprep.subr.bf16.mxu0 0
  %373 = vmatpush1.bf16.xpose.msra.mxu0 %v297
  %374 = vmatprep.subr.bf16.mxu0 0
  %375 = vmatpush1.bf16.xpose.msra.mxu0 %v294
  %376 = vmatprep.subr.bf16.mxu0 0
  %377 = vmatpush1.bf16.xpose.msra.mxu0 %v291
  %378 = vmatprep.subr.bf16.mxu0 0
  %379 = vmatpush2.bf16.xpose.msra.mxu0 %v336
  %380 = vmatprep.subr.bf16.mxu0 0
  %381 = vmatpush2.bf16.xpose.msra.mxu0 %v333
  %382 = vmatprep.subr.bf16.mxu0 0
  %383 = vmatpush2.bf16.xpose.msra.mxu0 %v330
  %384 = vmatprep.subr.bf16.mxu0 0
  %385 = vmatpush2.bf16.xpose.msra.mxu0 %v327
  %386 = vmatprep.subr.bf16.mxu0 0
  %387 = vmatpush2.bf16.xpose.msra.mxu0 %v324
  %388 = vmatprep.subr.bf16.mxu0 0
  %389 = vmatpush2.bf16.xpose.msra.mxu0 %v321
  %390 = vmatprep.subr.bf16.mxu0 0
  %391 = vmatpush2.bf16.xpose.msra.mxu0 %v318
  %392 = vmatprep.subr.bf16.mxu0 0
  %393 = vmatpush2.bf16.xpose.msra.mxu0 %v315
  %394 = vmatprep.mubr.bf16.mxu0 0
  %395 = vmatmul.mubr.bf16.gmra.mxu0 %v267
  %v396 = vpop.f32.mrf.mxu0
  %v397 = vadd.f32 %v148, %v396
  %v398 = vpop.f32.mrf.mxu0
  %v399 = vadd.f32 %v148, %v398
  %v400 = vpop.f32.mrf.mxu0
  %v401 = vadd.f32 %v153, %v400
  %v402 = vpop.f32.mrf.mxu0
  %v403 = vadd.f32 %v153, %v402
  %404 = vmatprep.mubr.bf16.mxu0 0
  %405 = vmatmul.mubr.bf16.gmra.mxu0 %v270
  %v406 = vpop.f32.mrf.mxu0
  %v407 = vadd.f32 %v158, %v406
  %v408 = vpop.f32.mrf.mxu0
  %v409 = vadd.f32 %v158, %v408
  %v410 = vpop.f32.mrf.mxu0
  %v411 = vadd.f32 %v163, %v410
  %v412 = vpop.f32.mrf.mxu0
  %v413 = vadd.f32 %v163, %v412
  %414 = vmatprep.mubr.bf16.mxu0 0
  %415 = vmatmul.mubr.bf16.gmra.mxu0 %v273
  %v416 = vpop.f32.mrf.mxu0
  %v417 = vadd.f32 %v168, %v416
  %v418 = vpop.f32.mrf.mxu0
  %v419 = vadd.f32 %v168, %v418
  %v420 = vpop.f32.mrf.mxu0
  %v421 = vadd.f32 %v173, %v420
  %v422 = vpop.f32.mrf.mxu0
  %v423 = vadd.f32 %v173, %v422
  %424 = vmatprep.mubr.bf16.mxu0 0
  %425 = vmatmul.mubr.bf16.gmra.mxu0 %v276
  %v426 = vpop.f32.mrf.mxu0
  %v427 = vadd.f32 %v178, %v426
  %v428 = vpop.f32.mrf.mxu0
  %v429 = vadd.f32 %v178, %v428
  %v430 = vpop.f32.mrf.mxu0
  %v431 = vadd.f32 %v183, %v430
  %v432 = vpop.f32.mrf.mxu0
  %v433 = vadd.f32 %v183, %v432
  %434 = vmatprep.mubr.bf16.mxu0 0
  %435 = vmatmul.mubr.bf16.gmra.mxu0 %v279
  %v436 = vpop.f32.mrf.mxu0
  %v437 = vadd.f32 %v188, %v436
  %v438 = vpop.f32.mrf.mxu0
  %v439 = vadd.f32 %v188, %v438
  %v440 = vpop.f32.mrf.mxu0
  %v441 = vadd.f32 %v193, %v440
  %v442 = vpop.f32.mrf.mxu0
  %v443 = vadd.f32 %v193, %v442
  %444 = vmatprep.mubr.bf16.mxu0 0
  %445 = vmatmul.mubr.bf16.gmra.mxu0 %v282
  %v446 = vpop.f32.mrf.mxu0
  %v447 = vadd.f32 %v198, %v446
  %v448 = vpop.f32.mrf.mxu0
  %v449 = vadd.f32 %v198, %v448
  %v450 = vpop.f32.mrf.mxu0
  %v451 = vadd.f32 %v203, %v450
  %v452 = vpop.f32.mrf.mxu0
  %v453 = vadd.f32 %v203, %v452
  %454 = vmatprep.mubr.bf16.mxu0 0
  %455 = vmatmul.mubr.bf16.gmra.mxu0 %v285
  %v456 = vpop.f32.mrf.mxu0
  %v457 = vadd.f32 %v208, %v456
  %v458 = vpop.f32.mrf.mxu0
  %v459 = vadd.f32 %v208, %v458
  %v460 = vpop.f32.mrf.mxu0
  %v461 = vadd.f32 %v213, %v460
  %v462 = vpop.f32.mrf.mxu0
  %v463 = vadd.f32 %v213, %v462
  %464 = vmatprep.mubr.bf16.mxu0 0
  %465 = vmatmul.mubr.bf16.gmra.mxu0 %v288
  %v466 = vpop.f32.mrf.mxu0
  %v467 = vadd.f32 %v218, %v466
  %v468 = vpop.f32.mrf.mxu0
  %v469 = vadd.f32 %v218, %v468
  %v470 = vpop.f32.mrf.mxu0
  %v471 = vadd.f32 %v223, %v470
  %v472 = vpop.f32.mrf.mxu0
  %v473 = vadd.f32 %v223, %v472
  %474 = vdwg.mxu0
  %475 = vmatprep.subr.bf16.mxu0 0
  %476 = vmatpush1.bf16.xpose.msra.mxu0 %v360
  %477 = vmatprep.subr.bf16.mxu0 0
  %478 = vmatpush1.bf16.xpose.msra.mxu0 %v357
  %479 = vmatprep.subr.bf16.mxu0 0
  %480 = vmatpush1.bf16.xpose.msra.mxu0 %v354
  %481 = vmatprep.subr.bf16.mxu0 0
  %482 = vmatpush1.bf16.xpose.msra.mxu0 %v351
  %483 = vmatprep.subr.bf16.mxu0 0
  %484 = vmatpush1.bf16.xpose.msra.mxu0 %v348
  %485 = vmatprep.subr.bf16.mxu0 0
  %486 = vmatpush1.bf16.xpose.msra.mxu0 %v345
  %487 = vmatprep.subr.bf16.mxu0 0
  %488 = vmatpush1.bf16.xpose.msra.mxu0 %v342
  %489 = vmatprep.subr.bf16.mxu0 0
  %490 = vmatpush1.bf16.xpose.msra.mxu0 %v339
  %491 = vmatprep.subr.bf16.mxu0 0
  %492 = vmatpush2.bf16.xpose.msra.mxu0 0
  %493 = vmatprep.subr.bf16.mxu0 0
  %494 = vmatpush2.bf16.xpose.msra.mxu0 0
  %495 = vmatprep.subr.bf16.mxu0 0
  %496 = vmatpush2.bf16.xpose.msra.mxu0 0
  %497 = vmatprep.subr.bf16.mxu0 0
  %498 = vmatpush2.bf16.xpose.msra.mxu0 0
  %499 = vmatprep.subr.bf16.mxu0 0
  %500 = vmatpush2.bf16.xpose.msra.mxu0 0
  %501 = vmatprep.subr.bf16.mxu0 0
  %502 = vmatpush2.bf16.xpose.msra.mxu0 0
  %503 = vmatprep.subr.bf16.mxu0 0
  %504 = vmatpush2.bf16.xpose.msra.mxu0 0
  %505 = vmatprep.subr.bf16.mxu0 0
  %506 = vmatpush2.bf16.xpose.msra.mxu0 0
  %507 = vmatprep.mubr.bf16.mxu0 0
  %508 = vmatmul.mubr.bf16.gmra.mxu0 %v267
  %v509 = vpop.f32.mrf.mxu0
  %v510 = vadd.f32 %v148, %v509
  %v511 = vpop.f32.mrf.mxu0
  %v512 = vpop.f32.mrf.mxu0
  %v513 = vadd.f32 %v153, %v512
  %v514 = vpop.f32.mrf.mxu0
  %515 = vmatprep.mubr.bf16.mxu0 0
  %516 = vmatmul.mubr.bf16.gmra.mxu0 %v270
  %v517 = vpop.f32.mrf.mxu0
  %v518 = vadd.f32 %v158, %v517
  %v519 = vpop.f32.mrf.mxu0
  %v520 = vpop.f32.mrf.mxu0
  %v521 = vadd.f32 %v163, %v520
  %v522 = vpop.f32.mrf.mxu0
  %523 = vmatprep.mubr.bf16.mxu0 0
  %524 = vmatmul.mubr.bf16.gmra.mxu0 %v273
  %v525 = vpop.f32.mrf.mxu0
  %v526 = vadd.f32 %v168, %v525
  %v527 = vpop.f32.mrf.mxu0
  %v528 = vpop.f32.mrf.mxu0
  %v529 = vadd.f32 %v173, %v528
  %v530 = vpop.f32.mrf.mxu0
  %531 = vmatprep.mubr.bf16.mxu0 0
  %532 = vmatmul.mubr.bf16.gmra.mxu0 %v276
  %v533 = vpop.f32.mrf.mxu0
  %v534 = vadd.f32 %v178, %v533
  %v535 = vpop.f32.mrf.mxu0
  %v536 = vpop.f32.mrf.mxu0
  %v537 = vadd.f32 %v183, %v536
  %v538 = vpop.f32.mrf.mxu0
  %539 = vmatprep.mubr.bf16.mxu0 0
  %540 = vmatmul.mubr.bf16.gmra.mxu0 %v279
  %v541 = vpop.f32.mrf.mxu0
  %v542 = vadd.f32 %v188, %v541
  %v543 = vpop.f32.mrf.mxu0
  %v544 = vpop.f32.mrf.mxu0
  %v545 = vadd.f32 %v193, %v544
  %v546 = vpop.f32.mrf.mxu0
  %547 = vmatprep.mubr.bf16.mxu0 0
  %548 = vmatmul.mubr.bf16.gmra.mxu0 %v282
  %v549 = vpop.f32.mrf.mxu0
  %v550 = vadd.f32 %v198, %v549
  %v551 = vpop.f32.mrf.mxu0
  %v552 = vpop.f32.mrf.mxu0
  %v553 = vadd.f32 %v203, %v552
  %v554 = vpop.f32.mrf.mxu0
  %555 = vmatprep.mubr.bf16.mxu0 0
  %556 = vmatmul.mubr.bf16.gmra.mxu0 %v285
  %v557 = vpop.f32.mrf.mxu0
  %v558 = vadd.f32 %v208, %v557
  %v559 = vpop.f32.mrf.mxu0
  %v560 = vpop.f32.mrf.mxu0
  %v561 = vadd.f32 %v213, %v560
  %v562 = vpop.f32.mrf.mxu0
  %563 = vmatprep.mubr.bf16.mxu0 0
  %564 = vmatmul.mubr.bf16.gmra.mxu0 %v288
  %v565 = vpop.f32.mrf.mxu0
  %v566 = vadd.f32 %v218, %v565
  %v567 = vpop.f32.mrf.mxu0
  %v568 = vpop.f32.mrf.mxu0
  %v569 = vadd.f32 %v223, %v568
  %v570 = vpop.f32.mrf.mxu0
  %571 = vdwg.mxu0
  %v572 = vmax.f32 %v397, 0.0
  %v573 = vmax.f32 %v399, 0.0
  %v574 = vmax.f32 %v510, 0.0
  %v575 = vmax.f32 %v401, 0.0
  %v576 = vmax.f32 %v403, 0.0
  %v577 = vmax.f32 %v513, 0.0
  %v578 = vmax.f32 %v407, 0.0
  %v579 = vmax.f32 %v409, 0.0
  %v580 = vmax.f32 %v518, 0.0
  %v581 = vmax.f32 %v411, 0.0
  %v582 = vmax.f32 %v413, 0.0
  %v583 = vmax.f32 %v521, 0.0
  %v584 = vmax.f32 %v417, 0.0
  %v585 = vmax.f32 %v419, 0.0
  %v586 = vmax.f32 %v526, 0.0
  %v587 = vmax.f32 %v421, 0.0
  %v588 = vmax.f32 %v423, 0.0
  %v589 = vmax.f32 %v529, 0.0
  %v590 = vmax.f32 %v427, 0.0
  %v591 = vmax.f32 %v429, 0.0
  %v592 = vmax.f32 %v534, 0.0
  %v593 = vmax.f32 %v431, 0.0
  %v594 = vmax.f32 %v433, 0.0
  %v595 = vmax.f32 %v537, 0.0
  %v596 = vmax.f32 %v437, 0.0
  %v597 = vmax.f32 %v439, 0.0
  %v598 = vmax.f32 %v542, 0.0
  %v599 = vmax.f32 %v441, 0.0
  %v600 = vmax.f32 %v443, 0.0
  %v601 = vmax.f32 %v545, 0.0
  %v602 = vmax.f32 %v447, 0.0
  %v603 = vmax.f32 %v449, 0.0
  %v604 = vmax.f32 %v550, 0.0
  %v605 = vmax.f32 %v451, 0.0
  %v606 = vmax.f32 %v453, 0.0
  %v607 = vmax.f32 %v553, 0.0
  %v608 = vmax.f32 %v457, 0.0
  %v609 = vmax.f32 %v459, 0.0
  %v610 = vmax.f32 %v558, 0.0
  %v611 = vmax.f32 %v461, 0.0
  %v612 = vmax.f32 %v463, 0.0
  %v613 = vmax.f32 %v561, 0.0
  %v614 = vmax.f32 %v467, 0.0
  %v615 = vmax.f32 %v469, 0.0
  %v616 = vmax.f32 %v566, 0.0
  %v617 = vmax.f32 %v471, 0.0
  %v618 = vmax.f32 %v473, 0.0
  %v619 = vmax.f32 %v569, 0.0
  %v620 = vld [vmem:[%s3] sm:$0xf]
  %v621 = vld [vmem:[%s3 + $0x4] sm:$0xf]
  %v622 = vld [vmem:[%s3 + $0x8] sm:$0xf]
  %v623 = vld [vmem:[%s3 + $0xc] sm:$0xf]
  %v624 = vld [vmem:[%s3 + $0x10] sm:$0xf]
  %v625 = vld [vmem:[%s3 + $0x14] sm:$0xf]
  %v626 = vld [vmem:[%s3 + $0x18] sm:$0xf]
  %v627 = vld [vmem:[%s3 + $0x1c] sm:$0xf]
  %v628 = vpack.c.bf16 %v575, %v572
  %v629 = vpack.c.bf16 %v576, %v573
  %v630 = vpack.c.bf16 %v577, %v574
  %v631 = vpack.c.bf16 %v581, %v578
  %v632 = vpack.c.bf16 %v582, %v579
  %v633 = vpack.c.bf16 %v583, %v580
  %v634 = vpack.c.bf16 %v587, %v584
  %v635 = vpack.c.bf16 %v588, %v585
  %v636 = vpack.c.bf16 %v589, %v586
  %v637 = vpack.c.bf16 %v593, %v590
  %v638 = vpack.c.bf16 %v594, %v591
  %v639 = vpack.c.bf16 %v595, %v592
  %v640 = vpack.c.bf16 %v599, %v596
  %v641 = vpack.c.bf16 %v600, %v597
  %v642 = vpack.c.bf16 %v601, %v598
  %v643 = vpack.c.bf16 %v605, %v602
  %v644 = vpack.c.bf16 %v606, %v603
  %v645 = vpack.c.bf16 %v607, %v604
  %v646 = vpack.c.bf16 %v611, %v608
  %v647 = vpack.c.bf16 %v612, %v609
  %v648 = vpack.c.bf16 %v613, %v610
  %v649 = vpack.c.bf16 %v617, %v614
  %v650 = vpack.c.bf16 %v618, %v615
  %v651 = vpack.c.bf16 %v619, %v616
  %v652 = vld [vmem:[%s4] sm:$0xff]
  %v653 = vld [vmem:[%s4 + $0x8] sm:$0xff]
  %v654 = vld [vmem:[%s4 + $0x10] sm:$0xff]
  %v655 = vld [vmem:[%s4 + $0x18] sm:$0xff]
  %v656 = vld [vmem:[%s4 + $0x20] sm:$0xff]
  %v657 = vld [vmem:[%s4 + $0x28] sm:$0xff]
  %v658 = vld [vmem:[%s4 + $0x30] sm:$0xff]
  %v659 = vld [vmem:[%s4 + $0x38] sm:$0xff]
  %661 = vset.pattern.permute.xlu0 0
  %662 = vperm.xlu0 %661, %v652
  %v663 = vpop.permute.xlu0 %662
  %666 = vset.pattern.permute.xlu0 0
  %667 = vperm.xlu0 %666, %v653
  %v668 = vpop.permute.xlu0 %667
  %671 = vset.pattern.permute.xlu0 0
  %672 = vperm.xlu0 %671, %v654
  %v673 = vpop.permute.xlu0 %672
  %676 = vset.pattern.permute.xlu0 0
  %677 = vperm.xlu0 %676, %v655
  %v678 = vpop.permute.xlu0 %677
  %681 = vset.pattern.permute.xlu0 0
  %682 = vperm.xlu0 %681, %v656
  %v683 = vpop.permute.xlu0 %682
  %686 = vset.pattern.permute.xlu0 0
  %687 = vperm.xlu0 %686, %v657
  %v688 = vpop.permute.xlu0 %687
  %691 = vset.pattern.permute.xlu0 0
  %692 = vperm.xlu0 %691, %v658
  %v693 = vpop.permute.xlu0 %692
  %696 = vset.pattern.permute.xlu0 0
  %697 = vperm.xlu0 %696, %v659
  %v698 = vpop.permute.xlu0 %697
  %v708 = vunpack.c.l.b16 %v620
  %v709 = vunpack.c.l.b16 %v621
  %v710 = vunpack.c.l.b16 %v622
  %v711 = vunpack.c.l.b16 %v623
  %v712 = vunpack.c.l.b16 %v624
  %v713 = vunpack.c.l.b16 %v625
  %v714 = vunpack.c.l.b16 %v626
  %v715 = vunpack.c.l.b16 %v627
  %v716 = vpack.c.b16 %v709, %v708
  %v717 = vpack.c.b16 %v711, %v710
  %v718 = vpack.c.b16 %v713, %v712
  %v719 = vpack.c.b16 %v715, %v714
  %724 = vmatprep.subr.bf16.mxu0 %v650
  %725 = vmatpush1.bf16.msra.mxu0 %v649
  %726 = vmatprep.subr.bf16.mxu0 %v647
  %727 = vmatpush1.bf16.msra.mxu0 %v646
  %728 = vmatprep.subr.bf16.mxu0 %v644
  %729 = vmatpush1.bf16.msra.mxu0 %v643
  %730 = vmatprep.subr.bf16.mxu0 %v641
  %731 = vmatpush1.bf16.msra.mxu0 %v640
  %732 = vmatprep.subr.bf16.mxu0 %v638
  %733 = vmatpush1.bf16.msra.mxu0 %v637
  %734 = vmatprep.subr.bf16.mxu0 %v635
  %735 = vmatpush1.bf16.msra.mxu0 %v634
  %736 = vmatprep.subr.bf16.mxu0 %v632
  %737 = vmatpush1.bf16.msra.mxu0 %v631
  %738 = vmatprep.subr.bf16.mxu0 %v629
  %739 = vmatpush1.bf16.msra.mxu0 %v628
  %740 = vmatprep.subr.bf16.mxu0 0
  %741 = vmatpush2.bf16.msra.mxu0 0
  %742 = vmatprep.subr.bf16.mxu0 0
  %743 = vmatpush2.bf16.msra.mxu0 0
  %744 = vmatprep.subr.bf16.mxu0 0
  %745 = vmatpush2.bf16.msra.mxu0 0
  %746 = vmatprep.subr.bf16.mxu0 0
  %747 = vmatpush2.bf16.msra.mxu0 0
  %748 = vmatprep.subr.bf16.mxu0 0
  %749 = vmatpush2.bf16.msra.mxu0 0
  %750 = vmatprep.subr.bf16.mxu0 0
  %751 = vmatpush2.bf16.msra.mxu0 0
  %752 = vmatprep.subr.bf16.mxu0 0
  %753 = vmatpush2.bf16.msra.mxu0 0
  %754 = vmatprep.subr.bf16.mxu0 0
  %755 = vmatpush2.bf16.msra.mxu0 0
  %756 = vmatprep.mubr.bf16.mxu0 0
  %757 = vmatmul.mubr.bf16.gmra.mxu0 %v716
  %v758 = vpop.f32.mrf.mxu0
  %v759 = vadd.f32 %v663, %v758
  %v760 = vpop.f32.mrf.mxu0
  %v761 = vadd.f32 %v663, %v760
  %v762 = vpop.f32.mrf.mxu0
  %v763 = vadd.f32 %v668, %v762
  %v764 = vpop.f32.mrf.mxu0
  %v765 = vadd.f32 %v668, %v764
  %766 = vmatprep.mubr.bf16.mxu0 0
  %767 = vmatmul.mubr.bf16.gmra.mxu0 %v717
  %v768 = vpop.f32.mrf.mxu0
  %v769 = vadd.f32 %v673, %v768
  %v770 = vpop.f32.mrf.mxu0
  %v771 = vadd.f32 %v673, %v770
  %v772 = vpop.f32.mrf.mxu0
  %v773 = vadd.f32 %v678, %v772
  %v774 = vpop.f32.mrf.mxu0
  %v775 = vadd.f32 %v678, %v774
  %776 = vmatprep.mubr.bf16.mxu0 0
  %777 = vmatmul.mubr.bf16.gmra.mxu0 %v718
  %v778 = vpop.f32.mrf.mxu0
  %v779 = vadd.f32 %v683, %v778
  %v780 = vpop.f32.mrf.mxu0
  %v781 = vadd.f32 %v683, %v780
  %v782 = vpop.f32.mrf.mxu0
  %v783 = vadd.f32 %v688, %v782
  %v784 = vpop.f32.mrf.mxu0
  %v785 = vadd.f32 %v688, %v784
  %786 = vmatprep.mubr.bf16.mxu0 0
  %787 = vmatmul.mubr.bf16.gmra.mxu0 %v719
  %v788 = vpop.f32.mrf.mxu0
  %v789 = vadd.f32 %v693, %v788
  %v790 = vpop.f32.mrf.mxu0
  %v791 = vadd.f32 %v693, %v790
  %v792 = vpop.f32.mrf.mxu0
  %v793 = vadd.f32 %v698, %v792
  %v794 = vpop.f32.mrf.mxu0
  %v795 = vadd.f32 %v698, %v794
  %796 = vdwg.mxu0
  %797 = vmatprep.subr.bf16.mxu0 0
  %798 = vmatpush1.bf16.msra.mxu0 %v651
  %799 = vmatprep.subr.bf16.mxu0 0
  %800 = vmatpush1.bf16.msra.mxu0 %v648
  %801 = vmatprep.subr.bf16.mxu0 0
  %802 = vmatpush1.bf16.msra.mxu0 %v645
  %803 = vmatprep.subr.bf16.mxu0 0
  %804 = vmatpush1.bf16.msra.mxu0 %v642
  %805 = vmatprep.subr.bf16.mxu0 0
  %806 = vmatpush1.bf16.msra.mxu0 %v639
  %807 = vmatprep.subr.bf16.mxu0 0
  %808 = vmatpush1.bf16.msra.mxu0 %v636
  %809 = vmatprep.subr.bf16.mxu0 0
  %810 = vmatpush1.bf16.msra.mxu0 %v633
  %811 = vmatprep.subr.bf16.mxu0 0
  %812 = vmatpush1.bf16.msra.mxu0 %v630
  %813 = vmatprep.subr.bf16.mxu0 0
  %814 = vmatpush2.bf16.msra.mxu0 0
  %815 = vmatprep.subr.bf16.mxu0 0
  %816 = vmatpush2.bf16.msra.mxu0 0
  %817 = vmatprep.subr.bf16.mxu0 0
  %818 = vmatpush2.bf16.msra.mxu0 0
  %819 = vmatprep.subr.bf16.mxu0 0
  %820 = vmatpush2.bf16.msra.mxu0 0
  %821 = vmatprep.subr.bf16.mxu0 0
  %822 = vmatpush2.bf16.msra.mxu0 0
  %823 = vmatprep.subr.bf16.mxu0 0
  %824 = vmatpush2.bf16.msra.mxu0 0
  %825 = vmatprep.subr.bf16.mxu0 0
  %826 = vmatpush2.bf16.msra.mxu0 0
  %827 = vmatprep.subr.bf16.mxu0 0
  %828 = vmatpush2.bf16.msra.mxu0 0
  %829 = vmatprep.mubr.bf16.mxu0 0
  %830 = vmatmul.mubr.bf16.gmra.mxu0 %v716
  %v831 = vpop.f32.mrf.mxu0
  %v832 = vadd.f32 %v663, %v831
  %v833 = vpop.f32.mrf.mxu0
  %v834 = vpop.f32.mrf.mxu0
  %v835 = vadd.f32 %v668, %v834
  %v836 = vpop.f32.mrf.mxu0
  %837 = vmatprep.mubr.bf16.mxu0 0
  %838 = vmatmul.mubr.bf16.gmra.mxu0 %v717
  %v839 = vpop.f32.mrf.mxu0
  %v840 = vadd.f32 %v673, %v839
  %v841 = vpop.f32.mrf.mxu0
  %v842 = vpop.f32.mrf.mxu0
  %v843 = vadd.f32 %v678, %v842
  %v844 = vpop.f32.mrf.mxu0
  %845 = vmatprep.mubr.bf16.mxu0 0
  %846 = vmatmul.mubr.bf16.gmra.mxu0 %v718
  %v847 = vpop.f32.mrf.mxu0
  %v848 = vadd.f32 %v683, %v847
  %v849 = vpop.f32.mrf.mxu0
  %v850 = vpop.f32.mrf.mxu0
  %v851 = vadd.f32 %v688, %v850
  %v852 = vpop.f32.mrf.mxu0
  %853 = vmatprep.mubr.bf16.mxu0 0
  %854 = vmatmul.mubr.bf16.gmra.mxu0 %v719
  %v855 = vpop.f32.mrf.mxu0
  %v856 = vadd.f32 %v693, %v855
  %v857 = vpop.f32.mrf.mxu0
  %v858 = vpop.f32.mrf.mxu0
  %v859 = vadd.f32 %v698, %v858
  %v860 = vpop.f32.mrf.mxu0
  %861 = vdwg.mxu0
  %v862 = vmax.f32 %v759, 0.0
  %v863 = vmax.f32 %v761, 0.0
  %v864 = vmax.f32 %v832, 0.0
  %v865 = vmax.f32 %v763, 0.0
  %v866 = vmax.f32 %v765, 0.0
  %v867 = vmax.f32 %v835, 0.0
  %v868 = vmax.f32 %v769, 0.0
  %v869 = vmax.f32 %v771, 0.0
  %v870 = vmax.f32 %v840, 0.0
  %v871 = vmax.f32 %v773, 0.0
  %v872 = vmax.f32 %v775, 0.0
  %v873 = vmax.f32 %v843, 0.0
  %v874 = vmax.f32 %v779, 0.0
  %v875 = vmax.f32 %v781, 0.0
  %v876 = vmax.f32 %v848, 0.0
  %v877 = vmax.f32 %v783, 0.0
  %v878 = vmax.f32 %v785, 0.0
  %v879 = vmax.f32 %v851, 0.0
  %v880 = vmax.f32 %v789, 0.0
  %v881 = vmax.f32 %v791, 0.0
  %v882 = vmax.f32 %v856, 0.0
  %v883 = vmax.f32 %v793, 0.0
  %v884 = vmax.f32 %v795, 0.0
  %v885 = vmax.f32 %v859, 0.0
  %v886 = vld [vmem:[%s5] sm:$0xf]
  %v887 = vld [vmem:[%s5 + $0x4] sm:$0xf]
  %v888 = vld [vmem:[%s5 + $0x8] sm:$0xf]
  %v889 = vld [vmem:[%s5 + $0xc] sm:$0xf]
  %v890 = vpack.c.bf16 %v865, %v862
  %v891 = vpack.c.bf16 %v866, %v863
  %v892 = vpack.c.bf16 %v867, %v864
  %v893 = vpack.c.bf16 %v871, %v868
  %v894 = vpack.c.bf16 %v872, %v869
  %v895 = vpack.c.bf16 %v873, %v870
  %v896 = vpack.c.bf16 %v877, %v874
  %v897 = vpack.c.bf16 %v878, %v875
  %v898 = vpack.c.bf16 %v879, %v876
  %v899 = vpack.c.bf16 %v883, %v880
  %v900 = vpack.c.bf16 %v884, %v881
  %v901 = vpack.c.bf16 %v885, %v882
  %v902 = vld [vmem:[%s6] sm:$0xff]
  %v903 = vld [vmem:[%s6 + $0x8] sm:$0xff]
  %v904 = vld [vmem:[%s6 + $0x10] sm:$0xff]
  %v905 = vld [vmem:[%s6 + $0x18] sm:$0xff]
  %907 = vset.pattern.permute.xlu0 0
  %908 = vperm.xlu0 %907, %v902
  %v909 = vpop.permute.xlu0 %908
  %912 = vset.pattern.permute.xlu0 0
  %913 = vperm.xlu0 %912, %v903
  %v914 = vpop.permute.xlu0 %913
  %917 = vset.pattern.permute.xlu0 0
  %918 = vperm.xlu0 %917, %v904
  %v919 = vpop.permute.xlu0 %918
  %922 = vset.pattern.permute.xlu0 0
  %923 = vperm.xlu0 %922, %v905
  %v924 = vpop.permute.xlu0 %923
  %v930 = vunpack.c.l.b16 %v886
  %v931 = vunpack.c.l.b16 %v887
  %v932 = vunpack.c.l.b16 %v888
  %v933 = vunpack.c.l.b16 %v889
  %v934 = vpack.c.b16 %v931, %v930
  %v935 = vpack.c.b16 %v933, %v932
  %vm936 = vcmask 523264
  %v938 = vsel %vm936, %v934, 0
  %v941 = vsel %vm936, %v935, 0
  %943 = vmatprep.subr.bf16.mxu0 0
  %944 = vmatpush1.bf16.msra.mxu0 0
  %945 = vmatprep.subr.bf16.mxu0 0
  %946 = vmatpush1.bf16.msra.mxu0 0
  %947 = vmatprep.subr.bf16.mxu0 0
  %948 = vmatpush1.bf16.msra.mxu0 0
  %949 = vmatprep.subr.bf16.mxu0 0
  %950 = vmatpush1.bf16.msra.mxu0 0
  %951 = vmatprep.subr.bf16.mxu0 %v900
  %952 = vmatpush1.bf16.msra.mxu0 %v899
  %953 = vmatprep.subr.bf16.mxu0 %v897
  %954 = vmatpush1.bf16.msra.mxu0 %v896
  %955 = vmatprep.subr.bf16.mxu0 %v894
  %956 = vmatpush1.bf16.msra.mxu0 %v893
  %957 = vmatprep.subr.bf16.mxu0 %v891
  %958 = vmatpush1.bf16.msra.mxu0 %v890
  %959 = vmatprep.subr.bf16.mxu0 0
  %960 = vmatpush2.bf16.msra.mxu0 0
  %961 = vmatprep.subr.bf16.mxu0 0
  %962 = vmatpush2.bf16.msra.mxu0 0
  %963 = vmatprep.subr.bf16.mxu0 0
  %964 = vmatpush2.bf16.msra.mxu0 0
  %965 = vmatprep.subr.bf16.mxu0 0
  %966 = vmatpush2.bf16.msra.mxu0 0
  %967 = vmatprep.subr.bf16.mxu0 0
  %968 = vmatpush2.bf16.msra.mxu0 0
  %969 = vmatprep.subr.bf16.mxu0 0
  %970 = vmatpush2.bf16.msra.mxu0 0
  %971 = vmatprep.subr.bf16.mxu0 0
  %972 = vmatpush2.bf16.msra.mxu0 0
  %973 = vmatprep.subr.bf16.mxu0 0
  %974 = vmatpush2.bf16.msra.mxu0 0
  %975 = vmatprep.mubr.bf16.mxu0 0
  %976 = vmatmul.mubr.bf16.gmra.mxu0 %v938
  %v977 = vpop.f32.mrf.mxu0
  %v978 = vadd.f32 %v909, %v977
  %v979 = vpop.f32.mrf.mxu0
  %v980 = vadd.f32 %v909, %v979
  %v981 = vpop.f32.mrf.mxu0
  %v982 = vadd.f32 %v914, %v981
  %v983 = vpop.f32.mrf.mxu0
  %v984 = vadd.f32 %v914, %v983
  %985 = vmatprep.mubr.bf16.mxu0 0
  %986 = vmatmul.mubr.bf16.gmra.mxu0 %v941
  %v987 = vpop.f32.mrf.mxu0
  %v988 = vadd.f32 %v919, %v987
  %v989 = vpop.f32.mrf.mxu0
  %v990 = vadd.f32 %v919, %v989
  %v991 = vpop.f32.mrf.mxu0
  %v992 = vadd.f32 %v924, %v991
  %v993 = vpop.f32.mrf.mxu0
  %v994 = vadd.f32 %v924, %v993
  %995 = vdwg.mxu0
  %996 = vmatprep.subr.bf16.mxu0 0
  %997 = vmatpush1.bf16.msra.mxu0 0
  %998 = vmatprep.subr.bf16.mxu0 0
  %999 = vmatpush1.bf16.msra.mxu0 0
  %1000 = vmatprep.subr.bf16.mxu0 0
  %1001 = vmatpush1.bf16.msra.mxu0 0
  %1002 = vmatprep.subr.bf16.mxu0 0
  %1003 = vmatpush1.bf16.msra.mxu0 0
  %1004 = vmatprep.subr.bf16.mxu0 0
  %1005 = vmatpush1.bf16.msra.mxu0 %v901
  %1006 = vmatprep.subr.bf16.mxu0 0
  %1007 = vmatpush1.bf16.msra.mxu0 %v898
  %1008 = vmatprep.subr.bf16.mxu0 0
  %1009 = vmatpush1.bf16.msra.mxu0 %v895
  %1010 = vmatprep.subr.bf16.mxu0 0
  %1011 = vmatpush1.bf16.msra.mxu0 %v892
  %1012 = vmatprep.subr.bf16.mxu0 0
  %1013 = vmatpush2.bf16.msra.mxu0 0
  %1014 = vmatprep.subr.bf16.mxu0 0
  %1015 = vmatpush2.bf16.msra.mxu0 0
  %1016 = vmatprep.subr.bf16.mxu0 0
  %1017 = vmatpush2.bf16.msra.mxu0 0
  %1018 = vmatprep.subr.bf16.mxu0 0
  %1019 = vmatpush2.bf16.msra.mxu0 0
  %1020 = vmatprep.subr.bf16.mxu0 0
  %1021 = vmatpush2.bf16.msra.mxu0 0
  %1022 = vmatprep.subr.bf16.mxu0 0
  %1023 = vmatpush2.bf16.msra.mxu0 0
  %1024 = vmatprep.subr.bf16.mxu0 0
  %1025 = vmatpush2.bf16.msra.mxu0 0
  %1026 = vmatprep.subr.bf16.mxu0 0
  %1027 = vmatpush2.bf16.msra.mxu0 0
  %1028 = vmatprep.mubr.bf16.mxu0 0
  %1029 = vmatmul.mubr.bf16.gmra.mxu0 %v938
  %v1030 = vpop.f32.mrf.mxu0
  %v1031 = vadd.f32 %v909, %v1030
  %v1032 = vpop.f32.mrf.mxu0
  %v1033 = vpop.f32.mrf.mxu0
  %v1034 = vadd.f32 %v914, %v1033
  %v1035 = vpop.f32.mrf.mxu0
  %1036 = vmatprep.mubr.bf16.mxu0 0
  %1037 = vmatmul.mubr.bf16.gmra.mxu0 %v941
  %v1038 = vpop.f32.mrf.mxu0
  %v1039 = vadd.f32 %v919, %v1038
  %v1040 = vpop.f32.mrf.mxu0
  %v1041 = vpop.f32.mrf.mxu0
  %v1042 = vadd.f32 %v924, %v1041
  %v1043 = vpop.f32.mrf.mxu0
  %1044 = vdwg.mxu0
  %v1045 = vmax.f32 %v978, 0.0
  %v1046 = vmax.f32 %v980, 0.0
  %v1047 = vmax.f32 %v1031, 0.0
  %v1048 = vmax.f32 %v982, 0.0
  %v1049 = vmax.f32 %v984, 0.0
  %v1050 = vmax.f32 %v1034, 0.0
  %v1051 = vmax.f32 %v988, 0.0
  %v1052 = vmax.f32 %v990, 0.0
  %v1053 = vmax.f32 %v1039, 0.0
  %v1054 = vmax.f32 %v992, 0.0
  %v1055 = vmax.f32 %v994, 0.0
  %v1056 = vmax.f32 %v1042, 0.0
  %v1057 = vld [vmem:[%s7] sm:$0xf]
  %v1058 = vld [vmem:[%s7 + $0x4] sm:$0xf]
  %v1059 = vpack.c.bf16 %v1048, %v1045
  %v1060 = vpack.c.bf16 %v1049, %v1046
  %v1061 = vpack.c.bf16 %v1050, %v1047
  %v1062 = vpack.c.bf16 %v1054, %v1051
  %v1063 = vpack.c.bf16 %v1055, %v1052
  %v1064 = vpack.c.bf16 %v1056, %v1053
  %v1065 = vld [vmem:[%s8] sm:$0xff]
  %v1066 = vld [vmem:[%s8 + $0x8] sm:$0xff]
  %1068 = vset.pattern.permute.xlu0 0
  %1069 = vperm.xlu0 %1068, %v1065
  %v1070 = vpop.permute.xlu0 %1069
  %1073 = vset.pattern.permute.xlu0 0
  %1074 = vperm.xlu0 %1073, %v1066
  %v1075 = vpop.permute.xlu0 %1074
  %v1079 = vunpack.c.l.b16 %v1057
  %v1080 = vunpack.c.l.b16 %v1058
  %v1081 = vpack.c.b16 %v1080, %v1079
  %v1083 = vsel %vm265, %v1081, 0
  %1085 = vmatprep.subr.bf16.mxu0 0
  %1086 = vmatpush1.bf16.msra.mxu0 0
  %1087 = vmatprep.subr.bf16.mxu0 0
  %1088 = vmatpush1.bf16.msra.mxu0 0
  %1089 = vmatprep.subr.bf16.mxu0 0
  %1090 = vmatpush1.bf16.msra.mxu0 0
  %1091 = vmatprep.subr.bf16.mxu0 0
  %1092 = vmatpush1.bf16.msra.mxu0 0
  %1093 = vmatprep.subr.bf16.mxu0 0
  %1094 = vmatpush1.bf16.msra.mxu0 0
  %1095 = vmatprep.subr.bf16.mxu0 0
  %1096 = vmatpush1.bf16.msra.mxu0 0
  %1097 = vmatprep.subr.bf16.mxu0 %v1063
  %1098 = vmatpush1.bf16.msra.mxu0 %v1062
  %1099 = vmatprep.subr.bf16.mxu0 %v1060
  %1100 = vmatpush1.bf16.msra.mxu0 %v1059
  %1101 = vmatprep.subr.bf16.mxu0 0
  %1102 = vmatpush2.bf16.msra.mxu0 0
  %1103 = vmatprep.subr.bf16.mxu0 0
  %1104 = vmatpush2.bf16.msra.mxu0 0
  %1105 = vmatprep.subr.bf16.mxu0 0
  %1106 = vmatpush2.bf16.msra.mxu0 0
  %1107 = vmatprep.subr.bf16.mxu0 0
  %1108 = vmatpush2.bf16.msra.mxu0 0
  %1109 = vmatprep.subr.bf16.mxu0 0
  %1110 = vmatpush2.bf16.msra.mxu0 0
  %1111 = vmatprep.subr.bf16.mxu0 0
  %1112 = vmatpush2.bf16.msra.mxu0 0
  %1113 = vmatprep.subr.bf16.mxu0 0
  %1114 = vmatpush2.bf16.msra.mxu0 0
  %1115 = vmatprep.subr.bf16.mxu0 0
  %1116 = vmatpush2.bf16.msra.mxu0 0
  %1117 = vmatprep.mubr.bf16.mxu0 0
  %1118 = vmatmul.mubr.bf16.gmra.mxu0 %v1083
  %v1119 = vpop.f32.mrf.mxu0
  %v1120 = vadd.f32 %v1070, %v1119
  %v1121 = vpop.f32.mrf.mxu0
  %v1122 = vadd.f32 %v1070, %v1121
  %v1123 = vpop.f32.mrf.mxu0
  %v1124 = vadd.f32 %v1075, %v1123
  %v1125 = vpop.f32.mrf.mxu0
  %v1126 = vadd.f32 %v1075, %v1125
  %1127 = vdwg.mxu0
  %1128 = vmatprep.subr.bf16.mxu0 0
  %1129 = vmatpush1.bf16.msra.mxu0 0
  %1130 = vmatprep.subr.bf16.mxu0 0
  %1131 = vmatpush1.bf16.msra.mxu0 0
  %1132 = vmatprep.subr.bf16.mxu0 0
  %1133 = vmatpush1.bf16.msra.mxu0 0
  %1134 = vmatprep.subr.bf16.mxu0 0
  %1135 = vmatpush1.bf16.msra.mxu0 0
  %1136 = vmatprep.subr.bf16.mxu0 0
  %1137 = vmatpush1.bf16.msra.mxu0 0
  %1138 = vmatprep.subr.bf16.mxu0 0
  %1139 = vmatpush1.bf16.msra.mxu0 0
  %1140 = vmatprep.subr.bf16.mxu0 0
  %1141 = vmatpush1.bf16.msra.mxu0 %v1064
  %1142 = vmatprep.subr.bf16.mxu0 0
  %1143 = vmatpush1.bf16.msra.mxu0 %v1061
  %1144 = vmatprep.subr.bf16.mxu0 0
  %1145 = vmatpush2.bf16.msra.mxu0 0
  %1146 = vmatprep.subr.bf16.mxu0 0
  %1147 = vmatpush2.bf16.msra.mxu0 0
  %1148 = vmatprep.subr.bf16.mxu0 0
  %1149 = vmatpush2.bf16.msra.mxu0 0
  %1150 = vmatprep.subr.bf16.mxu0 0
  %1151 = vmatpush2.bf16.msra.mxu0 0
  %1152 = vmatprep.subr.bf16.mxu0 0
  %1153 = vmatpush2.bf16.msra.mxu0 0
  %1154 = vmatprep.subr.bf16.mxu0 0
  %1155 = vmatpush2.bf16.msra.mxu0 0
  %1156 = vmatprep.subr.bf16.mxu0 0
  %1157 = vmatpush2.bf16.msra.mxu0 0
  %1158 = vmatprep.subr.bf16.mxu0 0
  %1159 = vmatpush2.bf16.msra.mxu0 0
  %1160 = vmatprep.mubr.bf16.mxu0 0
  %1161 = vmatmul.mubr.bf16.gmra.mxu0 %v1083
  %v1162 = vpop.f32.mrf.mxu0
  %v1163 = vadd.f32 %v1070, %v1162
  %v1164 = vpop.f32.mrf.mxu0
  %v1165 = vpop.f32.mrf.mxu0
  %v1166 = vadd.f32 %v1075, %v1165
  %v1167 = vpop.f32.mrf.mxu0
  %1168 = vdwg.mxu0
  %v1169 = vmax.f32 %v1120, 0.0
  %v1170 = vmax.f32 %v1122, 0.0
  %v1171 = vmax.f32 %v1163, 0.0
  %v1172 = vmax.f32 %v1124, 0.0
  %v1173 = vmax.f32 %v1126, 0.0
  %v1174 = vmax.f32 %v1166, 0.0
  %v1175 = vld [vmem:[%s9] sm:$0xff]
  %v1176 = vld [vmem:[%s9 + $0x8] sm:$0xff]
  %1178 = vset.pattern.permute.xlu0 0
  %1179 = vperm.xlu0 %1178, %v1175
  %v1180 = vpop.permute.xlu0 %1179
  %1183 = vset.pattern.permute.xlu0 0
  %1184 = vperm.xlu0 %1183, %v1176
  %v1185 = vpop.permute.xlu0 %1184
  %v1187 = vmul.f32 %v1169, %v1180
  %v1188 = vmul.f32 %v1170, %v1180
  %v1189 = vmul.f32 %v1171, %v1180
  %v1190 = vmul.f32 %v1172, %v1185
  %v1191 = vmul.f32 %v1173, %v1185
  %v1192 = vmul.f32 %v1174, %v1185
  %v1193 = vadd.f32 %v1187, %v1190
  %v1194 = vrot.slane %v1193, 4
  %v1195 = vadd.f32 %v1193, %v1194
  %v1196 = vrot.slane %v1195, 2
  %v1197 = vadd.f32 %v1195, %v1196
  %v1198 = vrot.slane %v1197, 1
  %v1199 = vadd.f32 %v1197, %v1198
  %v1200 = vadd.f32 %v1188, %v1191
  %v1201 = vrot.slane %v1200, 4
  %v1202 = vadd.f32 %v1200, %v1201
  %v1203 = vrot.slane %v1202, 2
  %v1204 = vadd.f32 %v1202, %v1203
  %v1205 = vrot.slane %v1204, 1
  %v1206 = vadd.f32 %v1204, %v1205
  %v1207 = vadd.f32 %v1189, %v1192
  %v1208 = vrot.slane %v1207, 4
  %v1209 = vadd.f32 %v1207, %v1208
  %v1210 = vrot.slane %v1209, 2
  %v1211 = vadd.f32 %v1209, %v1210
  %v1212 = vrot.slane %v1211, 1
  %v1213 = vadd.f32 %v1211, %v1212
  %v1214 = vld [vmem:[#allocation2] sm:$0x1]
  %1216 = vset.pattern.permute.xlu0 0
  %1217 = vperm.xlu0 %1216, %v1214
  %v1218 = vpop.permute.xlu0 %1217
  %v1220 = vlaneseq
  %v1221 = vshrl.u32 %v1220, 7
  %v1222 = vsub.s32 0, %v1221
  %v1223 = vrot.slane %v1218, %v1222
  %v1224 = vadd.f32 %v1199, %v1223
  %v1225 = vadd.f32 %v1206, %v1223
  %v1226 = vadd.f32 %v1213, %v1223
  %v1230 = vcombine.low %v1224, %v1225
  %v1232 = vunpack.c.l.s4 1966171168
  %v1233 = vunpack.c.0.s8 %v1232
  %v1234 = vlaneseq
  %v1235 = vshrl.u32 %v1234, 7
  %v1236 = vsub.s32 %v1233, %v1235
  %v1237 = vrot.slane %v1230, %v1236
  %v1239 = vunpack.c.l.s4 1966171168
  %v1240 = vunpack.c.0.s8 %v1239
  %v1241 = vlaneseq
  %v1242 = vshrl.u32 %v1241, 7
  %v1243 = vsub.s32 %v1240, %v1242
  %v1244 = vrot.slane %v1226, %v1243
  %v1245 = vcombine.low %v1237, %v1244
  %v1247 = vunpack.c.l.s4 1966171168
  %v1248 = vunpack.c.0.s8 %v1247
  %v1249 = vlaneseq
  %v1250 = vshrl.u32 %v1249, 7
  %v1251 = vsub.s32 %v1248, %v1250
  %v1252 = vrot.slane %v1245, %v1251
  %v1254 = vlaneseq
  %vm1255 = vcmp.ge.s32.totalorder %v1254, 0
  %vm1256 = vcmp.lt.s32.totalorder %v1254, 384
  %vm1257 = vmand %vm1255, %vm1256
  %1258 = vst.msk [vmem:[%s11] sm:$0x7] %vm1257, %v1252
  // Predicated region
  $region46: #{apartment_model_forward.1} parent=0 // pred_check
    _
  $region47: #{apartment_model_forward.1} parent=0 // pred_check_branch
    %1260 = sbr.rel (0) target = $region49
  $region48: #{apartment_model_forward.1} parent=0 // pred_region
    _
  $region49: #{apartment_model_forward.1} parent=0 // pred_fallthru
    _
  // Predicated region
  $region50: #{apartment_model_forward.1} parent=0 // pred_check
    _
  $region51: #{apartment_model_forward.1} parent=0 // pred_check_branch
    %1262 = sbr.rel (0) target = $region53
  $region52: #{apartment_model_forward.1} parent=0 // pred_region
    _
  $region53: #{apartment_model_forward.1} parent=0 // pred_fallthru
    _

</llo_original>
